<compile_context>
chip_gen: v7x
topology: tpu7x:2x2x1
jax: 0.10.0
libtpu: 0.0.40
codegen_flags: <defaults>
</compile_context>

<pallas_src>
import functools

import jax
import jax.numpy as jnp
from jax import lax
from jax.experimental import pallas as pl
from jax.experimental.pallas import tpu as pltpu

N_EMBD = 768
HEAD_SIZE = 64


def attention_kernel(x_ref, wqkv_ref, o_ref, *, batch, seq):
    # x_ref:    (B*T, C)   f32   (batch folded into the M dimension)
    # wqkv_ref: (C, 3H)    bf16  laid out as [Wq | Wk | Wv]
    # o_ref:    (B*T, H)   f32
    head_size = wqkv_ref.shape[1] // 3

    # Cast activations to bf16 in-kernel (keeps the wrapper free of a separate cast HLO).
    x = x_ref[...].astype(jnp.bfloat16)                      # (B*T, C)

    # Fused QKV projection: one wide MXU pass over all batches, f32 accumulation.
    qkv = jnp.dot(x, wqkv_ref[...],
                  preferred_element_type=jnp.float32)        # (B*T, 3H) f32

    scale = jnp.float32(head_size) ** -0.5

    # Small, fully unrolled loop over the batch (B=2): static slices, no 3D reshapes.
    for b in range(batch):
        r0 = b * seq
        q = qkv[r0:r0 + seq, 0:head_size]                    # (T, H) f32
        k = qkv[r0:r0 + seq, head_size:2 * head_size]
        v = qkv[r0:r0 + seq, 2 * head_size:3 * head_size]

        # Scores: contract on the head axis directly (no explicit k transpose).
        wei = lax.dot_general(
            q.astype(jnp.bfloat16), k.astype(jnp.bfloat16),
            dimension_numbers=(((1,), (1,)), ((), ())),
            preferred_element_type=jnp.float32,
        ) * scale                                            # (T, T) f32

        # Exact softmax in f32 (no causal mask in the reference module).
        wei_max = jnp.max(wei, axis=-1, keepdims=True)
        wei_exp = jnp.exp(wei - wei_max)
        denom = jnp.sum(wei_exp, axis=-1, keepdims=True)
        wei_sm = wei_exp / denom                             # exact divide (correctness fix)

        out = jnp.dot(wei_sm.astype(jnp.bfloat16), v.astype(jnp.bfloat16),
                      preferred_element_type=jnp.float32)    # (T, H) f32
        o_ref[r0:r0 + seq, :] = out.astype(o_ref.dtype)


def make_gpt_language_model_forward(wk, wq, wv):
    """One-time weight prep + jitted forward. wk/wq/wv: (C, H) f32 (transposed vs.
    PyTorch nn.Linear.weight). Returns forward(idx, targets=None) -> (logits, loss)."""
    C, H = wk.shape

    # Hoisted out of the per-call path: fused (C, 3H) bf16 weight, computed once and
    # captured as a constant by the jitted forward (no per-call concat/cast HLOs).
    w_qkv = jnp.concatenate([wq, wk, wv], axis=1).astype(jnp.bfloat16)   # (C, 3H)

    def _attention(idx):
        B, T, _ = idx.shape
        x2d = idx.reshape(B * T, C)   # fold batch into matmul M-dim (free view)

        cost = pl.CostEstimate(
            flops=2 * (B * T) * C * (3 * H) + 2 * B * T * T * H * 2,
            transcendentals=B * T * T,
            bytes_accessed=x2d.size * 4 + w_qkv.size * 2 + B * T * H * 4,
        )

        out2d = pl.pallas_call(
            functools.partial(attention_kernel, batch=B, seq=T),
            out_shape=jax.ShapeDtypeStruct((B * T, H), jnp.float32),
            grid=(1,),   # single grid step: no per-batch pipeline overhead
            in_specs=[
                pl.BlockSpec((B * T, C), lambda i: (0, 0)),
                pl.BlockSpec((C, 3 * H), lambda i: (0, 0)),
            ],
            out_specs=pl.BlockSpec((B * T, H), lambda i: (0, 0)),
            compiler_params=pltpu.CompilerParams(
                dimension_semantics=("arbitrary",),
            ),
            cost_estimate=cost,
        )(x2d, w_qkv)
        return out2d.reshape(B, T, H)

    attention_jit = jax.jit(_attention)

    def forward(idx, targets=None):
        logits = attention_jit(idx)
        if targets is None:
            loss = None
        else:
            B, T, Cc = logits.shape
            loss = jnp.mean((logits.reshape(B, T * Cc) - targets.reshape(B, T * Cc)) ** 2)
        return logits, loss

    return forward


def reference_forward_f32(x, wk, wq, wv):
    """Pure-JAX f32 reference matching the PyTorch module semantics."""
    k = x @ wk
    q = x @ wq
    v = x @ wv
    wei = (q @ jnp.swapaxes(k, -2, -1)) * (wk.shape[-1] ** -0.5)
    wei = jax.nn.softmax(wei, axis=-1)
    return wei @ v


def reference_forward_mixed(x, wk, wq, wv):
    """Reference mirroring the kernel's mixed precision (bf16 MXU in, f32 acc)."""
    H = wk.shape[1]
    xb = x.astype(jnp.bfloat16)
    wb = jnp.concatenate([wq, wk, wv], axis=1).astype(jnp.bfloat16)
    qkv = jnp.einsum('btc,ch->bth', xb, wb, preferred_element_type=jnp.float32)
    q, k, v = qkv[..., :H], qkv[..., H:2 * H], qkv[..., 2 * H:]
    wei = jnp.einsum('bqh,bkh->bqk',
                     q.astype(jnp.bfloat16), k.astype(jnp.bfloat16),
                     preferred_element_type=jnp.float32) * (H ** -0.5)
    wei = jax.nn.softmax(wei, axis=-1)
    return jnp.einsum('bqk,bkh->bqh',
                      wei.astype(jnp.bfloat16), v.astype(jnp.bfloat16),
                      preferred_element_type=jnp.float32)


if __name__ == "__main__":
    B, T, C = 2, 8, N_EMBD
    key = jax.random.PRNGKey(0)
    kx, kk, kq, kv = jax.random.split(key, 4)

    # Deterministic inputs / parameters (weights ~ N(0, 0.02) as in _init_weights).
    x = jax.random.normal(kx, (B, T, C), dtype=jnp.float32)
    wk = 0.02 * jax.random.normal(kk, (C, HEAD_SIZE), dtype=jnp.float32)
    wq = 0.02 * jax.random.normal(kq, (C, HEAD_SIZE), dtype=jnp.float32)
    wv = 0.02 * jax.random.normal(kv, (C, HEAD_SIZE), dtype=jnp.float32)

    forward = make_gpt_language_model_forward(wk, wq, wv)
    logits, loss = forward(x)
    logits = jax.block_until_ready(logits)

    assert logits.shape == (B, T, HEAD_SIZE)
    assert loss is None

    # Check against a reference using the same mixed precision as the kernel.
    ref_mixed = reference_forward_mixed(x, wk, wq, wv)
    max_err_mixed = float(jnp.max(jnp.abs(logits - ref_mixed)))
    assert jnp.allclose(logits, ref_mixed, atol=2e-3, rtol=2e-3), max_err_mixed

    # Looser sanity check against the pure-f32 PyTorch-equivalent reference
    # (bf16 MXU inputs bound the deviation at the ~1% level).
    ref_f32 = reference_forward_f32(x, wk, wq, wv)
    max_err_f32 = float(jnp.max(jnp.abs(logits - ref_f32)))
    assert jnp.allclose(logits, ref_f32, atol=3e-2, rtol=3e-2), max_err_f32

    print("KERNEL_OK")
</pallas_src>

<mosaic_0001>
module attributes {stable_mosaic.version = 11 : i64} {
  func.func @attention_kernel(%arg0: i32, %arg1: memref<16x768xf32, #tpu.memory_space<vmem>>, %arg2: memref<768x192xbf16, #tpu.memory_space<vmem>>, %arg3: memref<16x64xf32, #tpu.memory_space<vmem>>) attributes {dimension_semantics = [#tpu.dimension_semantics<arbitrary>], iteration_bounds = array<i64: 1>, scalar_prefetch = 0 : i64, scratch_operands = 0 : i64, tpu.core_type = #tpu.core_type<tc>, window_params = [{pipeline_mode = #tpu.pipeline_mode<synchronous>, transform_indices = @transform_0, window_bounds = array<i64: 16, 768>}, {pipeline_mode = #tpu.pipeline_mode<synchronous>, transform_indices = @transform_1, window_bounds = array<i64: 768, 192>}, {pipeline_mode = #tpu.pipeline_mode<synchronous>, transform_indices = @transform_2, window_bounds = array<i64: 16, 64>}]} {
    %c0 = arith.constant 0 : index
    %c0_0 = arith.constant 0 : index
    %0 = vector.load %arg1[%c0, %c0_0] : memref<16x768xf32, #tpu.memory_space<vmem>>, vector<16x768xf32>
    %1 = arith.truncf %0 : vector<16x768xf32> to vector<16x768xbf16>
    %c0_1 = arith.constant 0 : index
    %c0_2 = arith.constant 0 : index
    %2 = vector.load %arg2[%c0_1, %c0_2] : memref<768x192xbf16, #tpu.memory_space<vmem>>, vector<768x192xbf16>
    %cst = arith.constant dense<0.000000e+00> : vector<16x192xf32>
    %3 = tpu.matmul %1, %2, %cst {dimension_numbers = #tpu.dot_dimension_numbers<[1], [0], [0], [1], [0, 0, 1, 1], [], []>} : vector<16x768xbf16>, vector<768x192xbf16>, vector<16x192xf32> -> vector<16x192xf32>
    %cst_3 = arith.constant 6.400000e+01 : f32
    %cst_4 = arith.constant -5.000000e-01 : f32
    %4 = math.powf %cst_3, %cst_4 : f32
    %5 = vector.extract_strided_slice %3 {offsets = [0, 0], sizes = [8, 64], strides = [1, 1]} : vector<16x192xf32> to vector<8x64xf32>
    %6 = vector.extract_strided_slice %3 {offsets = [0, 64], sizes = [8, 64], strides = [1, 1]} : vector<16x192xf32> to vector<8x64xf32>
    %7 = vector.extract_strided_slice %3 {offsets = [0, 128], sizes = [8, 64], strides = [1, 1]} : vector<16x192xf32> to vector<8x64xf32>
    %8 = arith.truncf %5 : vector<8x64xf32> to vector<8x64xbf16>
    %9 = arith.truncf %6 : vector<8x64xf32> to vector<8x64xbf16>
    %cst_5 = arith.constant dense<0.000000e+00> : vector<8x8xf32>
    %10 = tpu.matmul %8, %9, %cst_5 {dimension_numbers = #tpu.dot_dimension_numbers<[1], [1], [0], [0], [0, 0, 1, 0], [], []>} : vector<8x64xbf16>, vector<8x64xbf16>, vector<8x8xf32> -> vector<8x8xf32>
    %11 = vector.broadcast %4 : f32 to vector<8x8xf32>
    %12 = arith.mulf %10, %11 : vector<8x8xf32>
    %cst_6 = arith.constant dense<0xFF800000> : vector<8xf32>
    %13 = vector.multi_reduction <maximumf>, %12, %cst_6 [1] : vector<8x8xf32> to vector<8xf32>
    %14 = vector.shape_cast %13 : vector<8xf32> to vector<8x1xf32>
    %15 = vector.broadcast %14 : vector<8x1xf32> to vector<8x8xf32>
    %16 = arith.subf %12, %15 : vector<8x8xf32>
    %17 = math.exp %16 : vector<8x8xf32>
    %cst_7 = arith.constant dense<0.000000e+00> : vector<8xf32>
    %18 = vector.multi_reduction <add>, %17, %cst_7 [1] : vector<8x8xf32> to vector<8xf32>
    %19 = vector.shape_cast %18 : vector<8xf32> to vector<8x1xf32>
    %20 = vector.broadcast %19 : vector<8x1xf32> to vector<8x8xf32>
    %21 = arith.divf %17, %20 : vector<8x8xf32>
    %22 = arith.truncf %21 : vector<8x8xf32> to vector<8x8xbf16>
    %23 = arith.truncf %7 : vector<8x64xf32> to vector<8x64xbf16>
    %cst_8 = arith.constant dense<0.000000e+00> : vector<8x64xf32>
    %24 = tpu.matmul %22, %23, %cst_8 {dimension_numbers = #tpu.dot_dimension_numbers<[1], [0], [0], [1], [0, 0, 1, 1], [], []>} : vector<8x8xbf16>, vector<8x64xbf16>, vector<8x64xf32> -> vector<8x64xf32>
    %c0_9 = arith.constant 0 : index
    %c0_10 = arith.constant 0 : index
    %25 = vector.load %arg3[%c0_9, %c0_10] : memref<16x64xf32, #tpu.memory_space<vmem>>, vector<8x64xf32>
    tpu.vector_store %arg3[%c0_9, %c0_10], %24 {strides = array<i32>} : memref<16x64xf32, #tpu.memory_space<vmem>>, vector<8x64xf32>,
    %26 = vector.extract_strided_slice %3 {offsets = [8, 0], sizes = [8, 64], strides = [1, 1]} : vector<16x192xf32> to vector<8x64xf32>
    %27 = vector.extract_strided_slice %3 {offsets = [8, 64], sizes = [8, 64], strides = [1, 1]} : vector<16x192xf32> to vector<8x64xf32>
    %28 = vector.extract_strided_slice %3 {offsets = [8, 128], sizes = [8, 64], strides = [1, 1]} : vector<16x192xf32> to vector<8x64xf32>
    %29 = arith.truncf %26 : vector<8x64xf32> to vector<8x64xbf16>
    %30 = arith.truncf %27 : vector<8x64xf32> to vector<8x64xbf16>
    %cst_11 = arith.constant dense<0.000000e+00> : vector<8x8xf32>
    %31 = tpu.matmul %29, %30, %cst_11 {dimension_numbers = #tpu.dot_dimension_numbers<[1], [1], [0], [0], [0, 0, 1, 0], [], []>} : vector<8x64xbf16>, vector<8x64xbf16>, vector<8x8xf32> -> vector<8x8xf32>
    %32 = vector.broadcast %4 : f32 to vector<8x8xf32>
    %33 = arith.mulf %31, %32 : vector<8x8xf32>
    %cst_12 = arith.constant dense<0xFF800000> : vector<8xf32>
    %34 = vector.multi_reduction <maximumf>, %33, %cst_12 [1] : vector<8x8xf32> to vector<8xf32>
    %35 = vector.shape_cast %34 : vector<8xf32> to vector<8x1xf32>
    %36 = vector.broadcast %35 : vector<8x1xf32> to vector<8x8xf32>
    %37 = arith.subf %33, %36 : vector<8x8xf32>
    %38 = math.exp %37 : vector<8x8xf32>
    %cst_13 = arith.constant dense<0.000000e+00> : vector<8xf32>
    %39 = vector.multi_reduction <add>, %38, %cst_13 [1] : vector<8x8xf32> to vector<8xf32>
    %40 = vector.shape_cast %39 : vector<8xf32> to vector<8x1xf32>
    %41 = vector.broadcast %40 : vector<8x1xf32> to vector<8x8xf32>
    %42 = arith.divf %38, %41 : vector<8x8xf32>
    %43 = arith.truncf %42 : vector<8x8xf32> to vector<8x8xbf16>
    %44 = arith.truncf %28 : vector<8x64xf32> to vector<8x64xbf16>
    %cst_14 = arith.constant dense<0.000000e+00> : vector<8x64xf32>
    %45 = tpu.matmul %43, %44, %cst_14 {dimension_numbers = #tpu.dot_dimension_numbers<[1], [0], [0], [1], [0, 0, 1, 1], [], []>} : vector<8x8xbf16>, vector<8x64xbf16>, vector<8x64xf32> -> vector<8x64xf32>
    %c8 = arith.constant 8 : index
    %c0_15 = arith.constant 0 : index
    %46 = vector.load %arg3[%c8, %c0_15] : memref<16x64xf32, #tpu.memory_space<vmem>>, vector<8x64xf32>
    tpu.vector_store %arg3[%c8, %c0_15], %45 {strides = array<i32>} : memref<16x64xf32, #tpu.memory_space<vmem>>, vector<8x64xf32>,
    return
  }
  func.func @transform_0(%arg0: i32) -> (i32, i32) {
    %c0_i32 = arith.constant 0 : i32
    %c0_i32_0 = arith.constant 0 : i32
    %c0_i32_1 = arith.constant 0 : i32
    return %c0_i32, %c0_i32_0 : i32, i32
  }
  func.func @transform_1(%arg0: i32) -> (i32, i32) {
    %c0_i32 = arith.constant 0 : i32
    %c0_i32_0 = arith.constant 0 : i32
    %c0_i32_1 = arith.constant 0 : i32
    return %c0_i32, %c0_i32_0 : i32, i32
  }
  func.func @transform_2(%arg0: i32) -> (i32, i32) {
    %c0_i32 = arith.constant 0 : i32
    %c0_i32_0 = arith.constant 0 : i32
    %c0_i32_1 = arith.constant 0 : i32
    return %c0_i32, %c0_i32_0 : i32, i32
  }
}

</mosaic_0001>

<llo_original>
// kernel: _attention.1
$region0: #{_attention.1}
  #allocation0 [shape = 'u32[]', space=smem, size = 0x4, offset = 0x4, fixed_abs, tag = 'smem constant byte address 0x4 - core index']
  #allocation1 [shape = 'u32[144,128]{1,0:T(1,128)}', space=vmem, size = 0x12000, scoped, tag = 'internal scratch']
  %s0 = inlined_call_operand.vmem [shape: f32[16,768], index: 0, kind: input, shape index: {}]
  %s1 = inlined_call_operand.vmem [shape: bf16[768,192], index: 1, kind: input, shape index: {}]
  %s2 = inlined_call_operand.hbm [shape: f32[16,64], index: 2, kind: output, shape index: {}]
  %s3 = sld [smem:[#allocation0]]
  $region18: #{_attention.1} parent=0
    _
  %s5 = ssub.s32 1, %s3
  %s6 = scalar_select 0, %s5, %s3
  $region1: #{_attention.1} parent=0
    #allocation2 [shape = 'u8[8192]{0}', space=vmem, size = 0x2000, scoped, tag = 'output window, operand 0, single buffered']
    #allocation3 [shape = 's32[1]{0}', space=sflag, size = 0x4, scoped, tag = 'scoped memory for _attention.1']
    %7 = vsyncpa [#allocation3], 0
    // Predicated region
    $region2: #{_attention.1} parent=1 // pred_check
      _
    $region3: #{_attention.1} parent=1 // pred_check_branch
      %9 = sbr.rel (0) target = $region5
    $region4: #{_attention.1} parent=1 // pred_region
      _
    $region5: #{_attention.1} parent=1 // pred_fallthru
      _
    // Predicated region
    $region6: #{_attention.1} parent=1 // pred_check
      _
    $region7: #{_attention.1} parent=1 // pred_check_branch
      %11 = sbr.rel (0) target = $region9
    $region8: #{_attention.1} parent=1 // pred_region
      _
    $region9: #{_attention.1} parent=1 // pred_fallthru
      _
    %v13 = vld [vmem:[%s0] sm:$0xff]
    %v14 = vld [vmem:[%s0 + $0x8] sm:$0xff]
    %v15 = vld [vmem:[%s0 + $0x10] sm:$0xff]
    %v16 = vld [vmem:[%s0 + $0x18] sm:$0xff]
    %v17 = vld [vmem:[%s0 + $0x20] sm:$0xff]
    %v18 = vld [vmem:[%s0 + $0x28] sm:$0xff]
    %v19 = vld [vmem:[%s0 + $0x30] sm:$0xff]
    %v20 = vld [vmem:[%s0 + $0x38] sm:$0xff]
    %v21 = vld [vmem:[%s0 + $0x40] sm:$0xff]
    %v22 = vld [vmem:[%s0 + $0x48] sm:$0xff]
    %v23 = vld [vmem:[%s0 + $0x50] sm:$0xff]
    %v24 = vld [vmem:[%s0 + $0x58] sm:$0xff]
    %v25 = vpack.c.bf16 %v19, %v13
    %v26 = vpack.c.bf16 %v20, %v14
    %v27 = vpack.c.bf16 %v21, %v15
    %v28 = vpack.c.bf16 %v22, %v16
    %v29 = vpack.c.bf16 %v23, %v17
    %v30 = vpack.c.bf16 %v24, %v18
    %v31 = vld [vmem:[%s1] sm:$0xff]
    %v32 = vld [vmem:[%s1 + $0x8] sm:$0xff]
    %v33 = vld [vmem:[%s1 + $0x10] sm:$0xff]
    %v34 = vld [vmem:[%s1 + $0x18] sm:$0xff]
    %v35 = vld [vmem:[%s1 + $0x20] sm:$0xff]
    %v36 = vld [vmem:[%s1 + $0x28] sm:$0xff]
    %v37 = vld [vmem:[%s1 + $0x30] sm:$0xff]
    %v38 = vld [vmem:[%s1 + $0x38] sm:$0xff]
    %v39 = vld [vmem:[%s1 + $0x40] sm:$0xff]
    %v40 = vld [vmem:[%s1 + $0x48] sm:$0xff]
    %v41 = vld [vmem:[%s1 + $0x50] sm:$0xff]
    %v42 = vld [vmem:[%s1 + $0x58] sm:$0xff]
    %v43 = vld [vmem:[%s1 + $0x60] sm:$0xff]
    %v44 = vld [vmem:[%s1 + $0x68] sm:$0xff]
    %v45 = vld [vmem:[%s1 + $0x70] sm:$0xff]
    %v46 = vld [vmem:[%s1 + $0x78] sm:$0xff]
    %v47 = vld [vmem:[%s1 + $0x80] sm:$0xff]
    %v48 = vld [vmem:[%s1 + $0x88] sm:$0xff]
    %v49 = vld [vmem:[%s1 + $0x90] sm:$0xff]
    %v50 = vld [vmem:[%s1 + $0x98] sm:$0xff]
    %v51 = vld [vmem:[%s1 + $0xa0] sm:$0xff]
    %v52 = vld [vmem:[%s1 + $0xa8] sm:$0xff]
    %v53 = vld [vmem:[%s1 + $0xb0] sm:$0xff]
    %v54 = vld [vmem:[%s1 + $0xb8] sm:$0xff]
    %v55 = vld [vmem:[%s1 + $0xc0] sm:$0xff]
    %v56 = vld [vmem:[%s1 + $0xc8] sm:$0xff]
    %v57 = vld [vmem:[%s1 + $0xd0] sm:$0xff]
    %v58 = vld [vmem:[%s1 + $0xd8] sm:$0xff]
    %v59 = vld [vmem:[%s1 + $0xe0] sm:$0xff]
    %v60 = vld [vmem:[%s1 + $0xe8] sm:$0xff]
    %v61 = vld [vmem:[%s1 + $0xf0] sm:$0xff]
    %v62 = vld [vmem:[%s1 + $0xf8] sm:$0xff]
    %v63 = vld [vmem:[%s1 + $0x100] sm:$0xff]
    %v64 = vld [vmem:[%s1 + $0x108] sm:$0xff]
    %v65 = vld [vmem:[%s1 + $0x110] sm:$0xff]
    %v66 = vld [vmem:[%s1 + $0x118] sm:$0xff]
    %v67 = vld [vmem:[%s1 + $0x120] sm:$0xff]
    %v68 = vld [vmem:[%s1 + $0x128] sm:$0xff]
    %v69 = vld [vmem:[%s1 + $0x130] sm:$0xff]
    %v70 = vld [vmem:[%s1 + $0x138] sm:$0xff]
    %v71 = vld [vmem:[%s1 + $0x140] sm:$0xff]
    %v72 = vld [vmem:[%s1 + $0x148] sm:$0xff]
    %v73 = vld [vmem:[%s1 + $0x150] sm:$0xff]
    %v74 = vld [vmem:[%s1 + $0x158] sm:$0xff]
    %v75 = vld [vmem:[%s1 + $0x160] sm:$0xff]
    %v76 = vld [vmem:[%s1 + $0x168] sm:$0xff]
    %v77 = vld [vmem:[%s1 + $0x170] sm:$0xff]
    %v78 = vld [vmem:[%s1 + $0x178] sm:$0xff]
    %v79 = vld [vmem:[%s1 + $0x180] sm:$0xff]
    %v80 = vld [vmem:[%s1 + $0x188] sm:$0xff]
    %v81 = vld [vmem:[%s1 + $0x190] sm:$0xff]
    %v82 = vld [vmem:[%s1 + $0x198] sm:$0xff]
    %v83 = vld [vmem:[%s1 + $0x1a0] sm:$0xff]
    %v84 = vld [vmem:[%s1 + $0x1a8] sm:$0xff]
    %v85 = vld [vmem:[%s1 + $0x1b0] sm:$0xff]
    %v86 = vld [vmem:[%s1 + $0x1b8] sm:$0xff]
    %v87 = vld [vmem:[%s1 + $0x1c0] sm:$0xff]
    %v88 = vld [vmem:[%s1 + $0x1c8] sm:$0xff]
    %v89 = vld [vmem:[%s1 + $0x1d0] sm:$0xff]
    %v90 = vld [vmem:[%s1 + $0x1d8] sm:$0xff]
    %v91 = vld [vmem:[%s1 + $0x1e0] sm:$0xff]
    %v92 = vld [vmem:[%s1 + $0x1e8] sm:$0xff]
    %v93 = vld [vmem:[%s1 + $0x1f0] sm:$0xff]
    %v94 = vld [vmem:[%s1 + $0x1f8] sm:$0xff]
    %v95 = vld [vmem:[%s1 + $0x200] sm:$0xff]
    %v96 = vld [vmem:[%s1 + $0x208] sm:$0xff]
    %v97 = vld [vmem:[%s1 + $0x210] sm:$0xff]
    %v98 = vld [vmem:[%s1 + $0x218] sm:$0xff]
    %v99 = vld [vmem:[%s1 + $0x220] sm:$0xff]
    %v100 = vld [vmem:[%s1 + $0x228] sm:$0xff]
    %v101 = vld [vmem:[%s1 + $0x230] sm:$0xff]
    %v102 = vld [vmem:[%s1 + $0x238] sm:$0xff]
    %v103 = vld [vmem:[%s1 + $0x240] sm:$0xff]
    %v104 = vld [vmem:[%s1 + $0x248] sm:$0xff]
    %v105 = vld [vmem:[%s1 + $0x250] sm:$0xff]
    %v106 = vld [vmem:[%s1 + $0x258] sm:$0xff]
    %v107 = vld [vmem:[%s1 + $0x260] sm:$0xff]
    %v108 = vld [vmem:[%s1 + $0x268] sm:$0xff]
    %v109 = vld [vmem:[%s1 + $0x270] sm:$0xff]
    %v110 = vld [vmem:[%s1 + $0x278] sm:$0xff]
    %v111 = vld [vmem:[%s1 + $0x280] sm:$0xff]
    %v112 = vld [vmem:[%s1 + $0x288] sm:$0xff]
    %v113 = vld [vmem:[%s1 + $0x290] sm:$0xff]
    %v114 = vld [vmem:[%s1 + $0x298] sm:$0xff]
    %v115 = vld [vmem:[%s1 + $0x2a0] sm:$0xff]
    %v116 = vld [vmem:[%s1 + $0x2a8] sm:$0xff]
    %v117 = vld [vmem:[%s1 + $0x2b0] sm:$0xff]
    %v118 = vld [vmem:[%s1 + $0x2b8] sm:$0xff]
    %v119 = vld [vmem:[%s1 + $0x2c0] sm:$0xff]
    %v120 = vld [vmem:[%s1 + $0x2c8] sm:$0xff]
    %v121 = vld [vmem:[%s1 + $0x2d0] sm:$0xff]
    %v122 = vld [vmem:[%s1 + $0x2d8] sm:$0xff]
    %v123 = vld [vmem:[%s1 + $0x2e0] sm:$0xff]
    %v124 = vld [vmem:[%s1 + $0x2e8] sm:$0xff]
    %v125 = vld [vmem:[%s1 + $0x2f0] sm:$0xff]
    %v126 = vld [vmem:[%s1 + $0x2f8] sm:$0xff]
    %v223 = vunpack.c.l.b16 %v31
    %v224 = vunpack.c.h.b16 %v31
    %v225 = vunpack.c.l.b16 %v32
    %v226 = vunpack.c.h.b16 %v32
    %v227 = vunpack.c.l.b16 %v33
    %v228 = vunpack.c.h.b16 %v33
    %v229 = vunpack.c.l.b16 %v34
    %v230 = vunpack.c.h.b16 %v34
    %v231 = vunpack.c.l.b16 %v35
    %v232 = vunpack.c.h.b16 %v35
    %v233 = vunpack.c.l.b16 %v36
    %v234 = vunpack.c.h.b16 %v36
    %v235 = vunpack.c.l.b16 %v37
    %v236 = vunpack.c.h.b16 %v37
    %v237 = vunpack.c.l.b16 %v38
    %v238 = vunpack.c.h.b16 %v38
    %v239 = vunpack.c.l.b16 %v39
    %v240 = vunpack.c.h.b16 %v39
    %v241 = vunpack.c.l.b16 %v40
    %v242 = vunpack.c.h.b16 %v40
    %v243 = vunpack.c.l.b16 %v41
    %v244 = vunpack.c.h.b16 %v41
    %v245 = vunpack.c.l.b16 %v42
    %v246 = vunpack.c.h.b16 %v42
    %v247 = vunpack.c.l.b16 %v43
    %v248 = vunpack.c.h.b16 %v43
    %v249 = vunpack.c.l.b16 %v44
    %v250 = vunpack.c.h.b16 %v44
    %v251 = vunpack.c.l.b16 %v45
    %v252 = vunpack.c.h.b16 %v45
    %v253 = vunpack.c.l.b16 %v46
    %v254 = vunpack.c.h.b16 %v46
    %v255 = vunpack.c.l.b16 %v47
    %v256 = vunpack.c.h.b16 %v47
    %v257 = vunpack.c.l.b16 %v48
    %v258 = vunpack.c.h.b16 %v48
    %v259 = vunpack.c.l.b16 %v49
    %v260 = vunpack.c.h.b16 %v49
    %v261 = vunpack.c.l.b16 %v50
    %v262 = vunpack.c.h.b16 %v50
    %v263 = vunpack.c.l.b16 %v51
    %v264 = vunpack.c.h.b16 %v51
    %v265 = vunpack.c.l.b16 %v52
    %v266 = vunpack.c.h.b16 %v52
    %v267 = vunpack.c.l.b16 %v53
    %v268 = vunpack.c.h.b16 %v53
    %v269 = vunpack.c.l.b16 %v54
    %v270 = vunpack.c.h.b16 %v54
    %v271 = vunpack.c.l.b16 %v55
    %v272 = vunpack.c.h.b16 %v55
    %v273 = vunpack.c.l.b16 %v56
    %v274 = vunpack.c.h.b16 %v56
    %v275 = vunpack.c.l.b16 %v57
    %v276 = vunpack.c.h.b16 %v57
    %v277 = vunpack.c.l.b16 %v58
    %v278 = vunpack.c.h.b16 %v58
    %v279 = vunpack.c.l.b16 %v59
    %v280 = vunpack.c.h.b16 %v59
    %v281 = vunpack.c.l.b16 %v60
    %v282 = vunpack.c.h.b16 %v60
    %v283 = vunpack.c.l.b16 %v61
    %v284 = vunpack.c.h.b16 %v61
    %v285 = vunpack.c.l.b16 %v62
    %v286 = vunpack.c.h.b16 %v62
    %v287 = vunpack.c.l.b16 %v63
    %v288 = vunpack.c.h.b16 %v63
    %v289 = vunpack.c.l.b16 %v64
    %v290 = vunpack.c.h.b16 %v64
    %v291 = vunpack.c.l.b16 %v65
    %v292 = vunpack.c.h.b16 %v65
    %v293 = vunpack.c.l.b16 %v66
    %v294 = vunpack.c.h.b16 %v66
    %v295 = vunpack.c.l.b16 %v67
    %v296 = vunpack.c.h.b16 %v67
    %v297 = vunpack.c.l.b16 %v68
    %v298 = vunpack.c.h.b16 %v68
    %v299 = vunpack.c.l.b16 %v69
    %v300 = vunpack.c.h.b16 %v69
    %v301 = vunpack.c.l.b16 %v70
    %v302 = vunpack.c.h.b16 %v70
    %v303 = vunpack.c.l.b16 %v71
    %v304 = vunpack.c.h.b16 %v71
    %v305 = vunpack.c.l.b16 %v72
    %v306 = vunpack.c.h.b16 %v72
    %v307 = vunpack.c.l.b16 %v73
    %v308 = vunpack.c.h.b16 %v73
    %v309 = vunpack.c.l.b16 %v74
    %v310 = vunpack.c.h.b16 %v74
    %v311 = vunpack.c.l.b16 %v75
    %v312 = vunpack.c.h.b16 %v75
    %v313 = vunpack.c.l.b16 %v76
    %v314 = vunpack.c.h.b16 %v76
    %v315 = vunpack.c.l.b16 %v77
    %v316 = vunpack.c.h.b16 %v77
    %v317 = vunpack.c.l.b16 %v78
    %v318 = vunpack.c.h.b16 %v78
    %v319 = vunpack.c.l.b16 %v79
    %v320 = vunpack.c.h.b16 %v79
    %v321 = vunpack.c.l.b16 %v80
    %v322 = vunpack.c.h.b16 %v80
    %v323 = vunpack.c.l.b16 %v81
    %v324 = vunpack.c.h.b16 %v81
    %v325 = vunpack.c.l.b16 %v82
    %v326 = vunpack.c.h.b16 %v82
    %v327 = vunpack.c.l.b16 %v83
    %v328 = vunpack.c.h.b16 %v83
    %v329 = vunpack.c.l.b16 %v84
    %v330 = vunpack.c.h.b16 %v84
    %v331 = vunpack.c.l.b16 %v85
    %v332 = vunpack.c.h.b16 %v85
    %v333 = vunpack.c.l.b16 %v86
    %v334 = vunpack.c.h.b16 %v86
    %v335 = vunpack.c.l.b16 %v87
    %v336 = vunpack.c.h.b16 %v87
    %v337 = vunpack.c.l.b16 %v88
    %v338 = vunpack.c.h.b16 %v88
    %v339 = vunpack.c.l.b16 %v89
    %v340 = vunpack.c.h.b16 %v89
    %v341 = vunpack.c.l.b16 %v90
    %v342 = vunpack.c.h.b16 %v90
    %v343 = vunpack.c.l.b16 %v91
    %v344 = vunpack.c.h.b16 %v91
    %v345 = vunpack.c.l.b16 %v92
    %v346 = vunpack.c.h.b16 %v92
    %v347 = vunpack.c.l.b16 %v93
    %v348 = vunpack.c.h.b16 %v93
    %v349 = vunpack.c.l.b16 %v94
    %v350 = vunpack.c.h.b16 %v94
    %v351 = vunpack.c.l.b16 %v95
    %v352 = vunpack.c.h.b16 %v95
    %v353 = vunpack.c.l.b16 %v96
    %v354 = vunpack.c.h.b16 %v96
    %v355 = vunpack.c.l.b16 %v97
    %v356 = vunpack.c.h.b16 %v97
    %v357 = vunpack.c.l.b16 %v98
    %v358 = vunpack.c.h.b16 %v98
    %v359 = vunpack.c.l.b16 %v99
    %v360 = vunpack.c.h.b16 %v99
    %v361 = vunpack.c.l.b16 %v100
    %v362 = vunpack.c.h.b16 %v100
    %v363 = vunpack.c.l.b16 %v101
    %v364 = vunpack.c.h.b16 %v101
    %v365 = vunpack.c.l.b16 %v102
    %v366 = vunpack.c.h.b16 %v102
    %v367 = vunpack.c.l.b16 %v103
    %v368 = vunpack.c.h.b16 %v103
    %v369 = vunpack.c.l.b16 %v104
    %v370 = vunpack.c.h.b16 %v104
    %v371 = vunpack.c.l.b16 %v105
    %v372 = vunpack.c.h.b16 %v105
    %v373 = vunpack.c.l.b16 %v106
    %v374 = vunpack.c.h.b16 %v106
    %v375 = vunpack.c.l.b16 %v107
    %v376 = vunpack.c.h.b16 %v107
    %v377 = vunpack.c.l.b16 %v108
    %v378 = vunpack.c.h.b16 %v108
    %v379 = vunpack.c.l.b16 %v109
    %v380 = vunpack.c.h.b16 %v109
    %v381 = vunpack.c.l.b16 %v110
    %v382 = vunpack.c.h.b16 %v110
    %v383 = vunpack.c.l.b16 %v111
    %v384 = vunpack.c.h.b16 %v111
    %v385 = vunpack.c.l.b16 %v112
    %v386 = vunpack.c.h.b16 %v112
    %v387 = vunpack.c.l.b16 %v113
    %v388 = vunpack.c.h.b16 %v113
    %v389 = vunpack.c.l.b16 %v114
    %v390 = vunpack.c.h.b16 %v114
    %v391 = vunpack.c.l.b16 %v115
    %v392 = vunpack.c.h.b16 %v115
    %v393 = vunpack.c.l.b16 %v116
    %v394 = vunpack.c.h.b16 %v116
    %v395 = vunpack.c.l.b16 %v117
    %v396 = vunpack.c.h.b16 %v117
    %v397 = vunpack.c.l.b16 %v118
    %v398 = vunpack.c.h.b16 %v118
    %v399 = vunpack.c.l.b16 %v119
    %v400 = vunpack.c.h.b16 %v119
    %v401 = vunpack.c.l.b16 %v120
    %v402 = vunpack.c.h.b16 %v120
    %v403 = vunpack.c.l.b16 %v121
    %v404 = vunpack.c.h.b16 %v121
    %v405 = vunpack.c.l.b16 %v122
    %v406 = vunpack.c.h.b16 %v122
    %v407 = vunpack.c.l.b16 %v123
    %v408 = vunpack.c.h.b16 %v123
    %v409 = vunpack.c.l.b16 %v124
    %v410 = vunpack.c.h.b16 %v124
    %v411 = vunpack.c.l.b16 %v125
    %v412 = vunpack.c.h.b16 %v125
    %v413 = vunpack.c.l.b16 %v126
    %v414 = vunpack.c.h.b16 %v126
    %v415 = vpack.c.b16 %v225, %v223
    %v416 = vpack.c.b16 %v226, %v224
    %v417 = vpack.c.b16 %v229, %v227
    %v418 = vpack.c.b16 %v230, %v228
    %v419 = vpack.c.b16 %v233, %v231
    %v420 = vpack.c.b16 %v234, %v232
    %v421 = vpack.c.b16 %v237, %v235
    %v422 = vpack.c.b16 %v238, %v236
    %v423 = vpack.c.b16 %v241, %v239
    %v424 = vpack.c.b16 %v242, %v240
    %v425 = vpack.c.b16 %v245, %v243
    %v426 = vpack.c.b16 %v246, %v244
    %v427 = vpack.c.b16 %v249, %v247
    %v428 = vpack.c.b16 %v250, %v248
    %v429 = vpack.c.b16 %v253, %v251
    %v430 = vpack.c.b16 %v254, %v252
    %v431 = vpack.c.b16 %v257, %v255
    %v432 = vpack.c.b16 %v258, %v256
    %v433 = vpack.c.b16 %v261, %v259
    %v434 = vpack.c.b16 %v262, %v260
    %v435 = vpack.c.b16 %v265, %v263
    %v436 = vpack.c.b16 %v266, %v264
    %v437 = vpack.c.b16 %v269, %v267
    %v438 = vpack.c.b16 %v270, %v268
    %v439 = vpack.c.b16 %v273, %v271
    %v440 = vpack.c.b16 %v274, %v272
    %v441 = vpack.c.b16 %v277, %v275
    %v442 = vpack.c.b16 %v278, %v276
    %v443 = vpack.c.b16 %v281, %v279
    %v444 = vpack.c.b16 %v282, %v280
    %v445 = vpack.c.b16 %v285, %v283
    %v446 = vpack.c.b16 %v286, %v284
    %v447 = vpack.c.b16 %v289, %v287
    %v448 = vpack.c.b16 %v290, %v288
    %v449 = vpack.c.b16 %v293, %v291
    %v450 = vpack.c.b16 %v294, %v292
    %v451 = vpack.c.b16 %v297, %v295
    %v452 = vpack.c.b16 %v298, %v296
    %v453 = vpack.c.b16 %v301, %v299
    %v454 = vpack.c.b16 %v302, %v300
    %v455 = vpack.c.b16 %v305, %v303
    %v456 = vpack.c.b16 %v306, %v304
    %v457 = vpack.c.b16 %v309, %v307
    %v458 = vpack.c.b16 %v310, %v308
    %v459 = vpack.c.b16 %v313, %v311
    %v460 = vpack.c.b16 %v314, %v312
    %v461 = vpack.c.b16 %v317, %v315
    %v462 = vpack.c.b16 %v318, %v316
    %v463 = vpack.c.b16 %v321, %v319
    %v464 = vpack.c.b16 %v322, %v320
    %v465 = vpack.c.b16 %v325, %v323
    %v466 = vpack.c.b16 %v326, %v324
    %v467 = vpack.c.b16 %v329, %v327
    %v468 = vpack.c.b16 %v330, %v328
    %v469 = vpack.c.b16 %v333, %v331
    %v470 = vpack.c.b16 %v334, %v332
    %v471 = vpack.c.b16 %v337, %v335
    %v472 = vpack.c.b16 %v338, %v336
    %v473 = vpack.c.b16 %v341, %v339
    %v474 = vpack.c.b16 %v342, %v340
    %v475 = vpack.c.b16 %v345, %v343
    %v476 = vpack.c.b16 %v346, %v344
    %v477 = vpack.c.b16 %v349, %v347
    %v478 = vpack.c.b16 %v350, %v348
    %v479 = vpack.c.b16 %v353, %v351
    %v480 = vpack.c.b16 %v354, %v352
    %v481 = vpack.c.b16 %v357, %v355
    %v482 = vpack.c.b16 %v358, %v356
    %v483 = vpack.c.b16 %v361, %v359
    %v484 = vpack.c.b16 %v362, %v360
    %v485 = vpack.c.b16 %v365, %v363
    %v486 = vpack.c.b16 %v366, %v364
    %v487 = vpack.c.b16 %v369, %v367
    %v488 = vpack.c.b16 %v370, %v368
    %v489 = vpack.c.b16 %v373, %v371
    %v490 = vpack.c.b16 %v374, %v372
    %v491 = vpack.c.b16 %v377, %v375
    %v492 = vpack.c.b16 %v378, %v376
    %v493 = vpack.c.b16 %v381, %v379
    %v494 = vpack.c.b16 %v382, %v380
    %v495 = vpack.c.b16 %v385, %v383
    %v496 = vpack.c.b16 %v386, %v384
    %v497 = vpack.c.b16 %v389, %v387
    %v498 = vpack.c.b16 %v390, %v388
    %v499 = vpack.c.b16 %v393, %v391
    %v500 = vpack.c.b16 %v394, %v392
    %v501 = vpack.c.b16 %v397, %v395
    %v502 = vpack.c.b16 %v398, %v396
    %v503 = vpack.c.b16 %v401, %v399
    %v504 = vpack.c.b16 %v402, %v400
    %v505 = vpack.c.b16 %v405, %v403
    %v506 = vpack.c.b16 %v406, %v404
    %v507 = vpack.c.b16 %v409, %v407
    %v508 = vpack.c.b16 %v410, %v408
    %v509 = vpack.c.b16 %v413, %v411
    %v510 = vpack.c.b16 %v414, %v412
    %607 = vmatprep.subr.bf16.mxu0 %v416
    %608 = vmatpush1.bf16.msra.mxu0 %v415
    %609 = vmatprep.subr.bf16.mxu0 %v418
    %610 = vmatpush1.bf16.msra.mxu0 %v417
    %611 = vmatprep.subr.bf16.mxu0 %v420
    %612 = vmatpush1.bf16.msra.mxu0 %v419
    %613 = vmatprep.subr.bf16.mxu0 %v422
    %614 = vmatpush1.bf16.msra.mxu0 %v421
    %615 = vmatprep.subr.bf16.mxu0 %v424
    %616 = vmatpush1.bf16.msra.mxu0 %v423
    %617 = vmatprep.subr.bf16.mxu0 %v426
    %618 = vmatpush1.bf16.msra.mxu0 %v425
    %619 = vmatprep.subr.bf16.mxu0 %v428
    %620 = vmatpush1.bf16.msra.mxu0 %v427
    %621 = vmatprep.subr.bf16.mxu0 %v430
    %622 = vmatpush1.bf16.msra.mxu0 %v429
    %623 = vmatprep.subr.bf16.mxu0 %v432
    %624 = vmatpush1.bf16.msra.mxu0 %v431
    %625 = vmatprep.subr.bf16.mxu0 %v434
    %626 = vmatpush1.bf16.msra.mxu0 %v433
    %627 = vmatprep.subr.bf16.mxu0 %v436
    %628 = vmatpush1.bf16.msra.mxu0 %v435
    %629 = vmatprep.subr.bf16.mxu0 %v438
    %630 = vmatpush1.bf16.msra.mxu0 %v437
    %631 = vmatprep.subr.bf16.mxu0 %v440
    %632 = vmatpush1.bf16.msra.mxu0 %v439
    %633 = vmatprep.subr.bf16.mxu0 %v442
    %634 = vmatpush1.bf16.msra.mxu0 %v441
    %635 = vmatprep.subr.bf16.mxu0 %v444
    %636 = vmatpush1.bf16.msra.mxu0 %v443
    %637 = vmatprep.subr.bf16.mxu0 %v446
    %638 = vmatpush1.bf16.msra.mxu0 %v445
    %639 = vmatprep.mubr.bf16.mxu0 %v26
    %640 = vmatmul.mubr.bf16.gmra.mrb[0].mxu0 %v25
    %v641 = vpop.f32.mrb[0].mxu0
    %v642 = vadd.f32 0.0, %v641
    %v643 = vpop.f32.mrb[0].mxu0
    %v644 = vadd.f32 0.0, %v643
    %v645 = vpop.f32.mrb[0].mxu0
    %v646 = vadd.f32 0.0, %v645
    %v647 = vpop.f32.mrb[0].mxu0
    %v648 = vadd.f32 0.0, %v647
    %649 = vdwg.mxu0
    %650 = vmatprep.subr.bf16.mxu0 %v448
    %651 = vmatpush1.bf16.msra.mxu0 %v447
    %652 = vmatprep.subr.bf16.mxu0 %v450
    %653 = vmatpush1.bf16.msra.mxu0 %v449
    %654 = vmatprep.subr.bf16.mxu0 %v452
    %655 = vmatpush1.bf16.msra.mxu0 %v451
    %656 = vmatprep.subr.bf16.mxu0 %v454
    %657 = vmatpush1.bf16.msra.mxu0 %v453
    %658 = vmatprep.subr.bf16.mxu0 %v456
    %659 = vmatpush1.bf16.msra.mxu0 %v455
    %660 = vmatprep.subr.bf16.mxu0 %v458
    %661 = vmatpush1.bf16.msra.mxu0 %v457
    %662 = vmatprep.subr.bf16.mxu0 %v460
    %663 = vmatpush1.bf16.msra.mxu0 %v459
    %664 = vmatprep.subr.bf16.mxu0 %v462
    %665 = vmatpush1.bf16.msra.mxu0 %v461
    %666 = vmatprep.subr.bf16.mxu0 %v464
    %667 = vmatpush1.bf16.msra.mxu0 %v463
    %668 = vmatprep.subr.bf16.mxu0 %v466
    %669 = vmatpush1.bf16.msra.mxu0 %v465
    %670 = vmatprep.subr.bf16.mxu0 %v468
    %671 = vmatpush1.bf16.msra.mxu0 %v467
    %672 = vmatprep.subr.bf16.mxu0 %v470
    %673 = vmatpush1.bf16.msra.mxu0 %v469
    %674 = vmatprep.subr.bf16.mxu0 %v472
    %675 = vmatpush1.bf16.msra.mxu0 %v471
    %676 = vmatprep.subr.bf16.mxu0 %v474
    %677 = vmatpush1.bf16.msra.mxu0 %v473
    %678 = vmatprep.subr.bf16.mxu0 %v476
    %679 = vmatpush1.bf16.msra.mxu0 %v475
    %680 = vmatprep.subr.bf16.mxu0 %v478
    %681 = vmatpush1.bf16.msra.mxu0 %v477
    %682 = vmatprep.mubr.bf16.mxu0 %v28
    %683 = vmatmul.mubr.bf16.gmra.mrb[0].mxu0 %v27
    %v684 = vpop.f32.mrb[0].mxu0
    %v685 = vadd.f32 %v642, %v684
    %v686 = vpop.f32.mrb[0].mxu0
    %v687 = vadd.f32 %v644, %v686
    %v688 = vpop.f32.mrb[0].mxu0
    %v689 = vadd.f32 %v646, %v688
    %v690 = vpop.f32.mrb[0].mxu0
    %v691 = vadd.f32 %v648, %v690
    %692 = vdwg.mxu0
    %693 = vmatprep.subr.bf16.mxu0 %v480
    %694 = vmatpush1.bf16.msra.mxu0 %v479
    %695 = vmatprep.subr.bf16.mxu0 %v482
    %696 = vmatpush1.bf16.msra.mxu0 %v481
    %697 = vmatprep.subr.bf16.mxu0 %v484
    %698 = vmatpush1.bf16.msra.mxu0 %v483
    %699 = vmatprep.subr.bf16.mxu0 %v486
    %700 = vmatpush1.bf16.msra.mxu0 %v485
    %701 = vmatprep.subr.bf16.mxu0 %v488
    %702 = vmatpush1.bf16.msra.mxu0 %v487
    %703 = vmatprep.subr.bf16.mxu0 %v490
    %704 = vmatpush1.bf16.msra.mxu0 %v489
    %705 = vmatprep.subr.bf16.mxu0 %v492
    %706 = vmatpush1.bf16.msra.mxu0 %v491
    %707 = vmatprep.subr.bf16.mxu0 %v494
    %708 = vmatpush1.bf16.msra.mxu0 %v493
    %709 = vmatprep.subr.bf16.mxu0 %v496
    %710 = vmatpush1.bf16.msra.mxu0 %v495
    %711 = vmatprep.subr.bf16.mxu0 %v498
    %712 = vmatpush1.bf16.msra.mxu0 %v497
    %713 = vmatprep.subr.bf16.mxu0 %v500
    %714 = vmatpush1.bf16.msra.mxu0 %v499
    %715 = vmatprep.subr.bf16.mxu0 %v502
    %716 = vmatpush1.bf16.msra.mxu0 %v501
    %717 = vmatprep.subr.bf16.mxu0 %v504
    %718 = vmatpush1.bf16.msra.mxu0 %v503
    %719 = vmatprep.subr.bf16.mxu0 %v506
    %720 = vmatpush1.bf16.msra.mxu0 %v505
    %721 = vmatprep.subr.bf16.mxu0 %v508
    %722 = vmatpush1.bf16.msra.mxu0 %v507
    %723 = vmatprep.subr.bf16.mxu0 %v510
    %724 = vmatpush1.bf16.msra.mxu0 %v509
    %725 = vmatprep.mubr.bf16.mxu0 %v30
    %726 = vmatmul.mubr.bf16.gmra.mrb[0].mxu0 %v29
    %v727 = vpop.f32.mrb[0].mxu0
    %v728 = vadd.f32 %v685, %v727
    %v729 = vpop.f32.mrb[0].mxu0
    %v730 = vadd.f32 %v687, %v729
    %v731 = vpop.f32.mrb[0].mxu0
    %v732 = vadd.f32 %v689, %v731
    %v733 = vpop.f32.mrb[0].mxu0
    %v734 = vadd.f32 %v691, %v733
    %735 = vdwg.mxu0
    %v736 = vpack.c.bf16 %v728, %v728
    %738 = vrot.lane.b32.xlu0 %v736, 64
    %v739 = vpop.permute.xlu0 %738
    %vm740 = vcmask 523264
    %v742 = vsel %vm740, %v736, 0
    %v745 = vsel %vm740, %v739, 0
    %747 = vmatprep.subr.bf16.mxu0 0
    %748 = vmatpush1.bf16.xpose.msra.mxu0 %v745
    %749 = vmatprep.subr.bf16.mxu0 0
    %750 = vmatpush1.bf16.xpose.msra.mxu0 0
    %751 = vmatprep.subr.bf16.mxu0 0
    %752 = vmatpush1.bf16.xpose.msra.mxu0 0
    %753 = vmatprep.subr.bf16.mxu0 0
    %754 = vmatpush1.bf16.xpose.msra.mxu0 0
    %755 = vmatprep.subr.bf16.mxu0 0
    %756 = vmatpush1.bf16.xpose.msra.mxu0 0
    %757 = vmatprep.subr.bf16.mxu0 0
    %758 = vmatpush1.bf16.xpose.msra.mxu0 0
    %759 = vmatprep.subr.bf16.mxu0 0
    %760 = vmatpush1.bf16.xpose.msra.mxu0 0
    %761 = vmatprep.subr.bf16.mxu0 0
    %762 = vmatpush1.bf16.xpose.msra.mxu0 0
    %763 = vmatprep.subr.bf16.mxu0 0
    %764 = vmatpush1.bf16.xpose.msra.mxu0 0
    %765 = vmatprep.subr.bf16.mxu0 0
    %766 = vmatpush1.bf16.xpose.msra.mxu0 0
    %767 = vmatprep.subr.bf16.mxu0 0
    %768 = vmatpush1.bf16.xpose.msra.mxu0 0
    %769 = vmatprep.subr.bf16.mxu0 0
    %770 = vmatpush1.bf16.xpose.msra.mxu0 0
    %771 = vmatprep.subr.bf16.mxu0 0
    %772 = vmatpush1.bf16.xpose.msra.mxu0 0
    %773 = vmatprep.subr.bf16.mxu0 0
    %774 = vmatpush1.bf16.xpose.msra.mxu0 0
    %775 = vmatprep.subr.bf16.mxu0 0
    %776 = vmatpush1.bf16.xpose.msra.mxu0 0
    %777 = vmatprep.subr.bf16.mxu0 0
    %778 = vmatpush1.bf16.xpose.msra.mxu0 0
    %779 = vmatprep.mubr.bf16.mxu0 0
    %780 = vmatmul.mubr.bf16.gmra.mrb[0].mxu0 %v742
    %v781 = vpop.f32.mrb[0].mxu0
    %v782 = vadd.f32 0.0, %v781
    %v783 = vpop.f32.mrb[0].mxu0
    %v784 = vpop.f32.mrb[0].mxu0
    %v785 = vpop.f32.mrb[0].mxu0
    %786 = vdwg.mxu0
    %v787 = vmul.f32 %v782, 0.125
    %vm788 = vcmask 64512
    %v789 = vsel %vm788, %v787, -inf
    %790 = vmax.xlane.f32.xlu0 %v789
    %v791 = vpop.xlane.xlu0 %790
    %v792 = vsub.f32 %v787, %v791
    %v793 = vmul.f32 %v792, 1.442695
    %v794 = vpow.pop %v793
    %v795 = vsel %vm788, %v794, 0.0
    %796 = vadd.xlane.f32.xlu0 %v795
    %v797 = vpop.xlane.xlu0 %796
    %v798 = vrcp.pop %v797
    %v799 = vmul.f32 %v794, %v798
    %v800 = vpack.c.bf16 %v799, %v799
    %v801 = vpack.c.bf16 %v730, %v730
    %v803 = vsel %vm788, %v800, 0
    %vm805 = vcmask 1043456
    %v807 = vsel %vm805, %v801, 0
    %809 = vmatprep.subr.bf16.mxu0 0
    %810 = vmatpush1.bf16.msra.mxu0 %v807
    %811 = vmatprep.subr.bf16.mxu0 0
    %812 = vmatpush1.bf16.msra.mxu0 0
    %813 = vmatprep.subr.bf16.mxu0 0
    %814 = vmatpush1.bf16.msra.mxu0 0
    %815 = vmatprep.subr.bf16.mxu0 0
    %816 = vmatpush1.bf16.msra.mxu0 0
    %817 = vmatprep.subr.bf16.mxu0 0
    %818 = vmatpush1.bf16.msra.mxu0 0
    %819 = vmatprep.subr.bf16.mxu0 0
    %820 = vmatpush1.bf16.msra.mxu0 0
    %821 = vmatprep.subr.bf16.mxu0 0
    %822 = vmatpush1.bf16.msra.mxu0 0
    %823 = vmatprep.subr.bf16.mxu0 0
    %824 = vmatpush1.bf16.msra.mxu0 0
    %825 = vmatprep.subr.bf16.mxu0 0
    %826 = vmatpush1.bf16.msra.mxu0 0
    %827 = vmatprep.subr.bf16.mxu0 0
    %828 = vmatpush1.bf16.msra.mxu0 0
    %829 = vmatprep.subr.bf16.mxu0 0
    %830 = vmatpush1.bf16.msra.mxu0 0
    %831 = vmatprep.subr.bf16.mxu0 0
    %832 = vmatpush1.bf16.msra.mxu0 0
    %833 = vmatprep.subr.bf16.mxu0 0
    %834 = vmatpush1.bf16.msra.mxu0 0
    %835 = vmatprep.subr.bf16.mxu0 0
    %836 = vmatpush1.bf16.msra.mxu0 0
    %837 = vmatprep.subr.bf16.mxu0 0
    %838 = vmatpush1.bf16.msra.mxu0 0
    %839 = vmatprep.subr.bf16.mxu0 0
    %840 = vmatpush1.bf16.msra.mxu0 0
    %841 = vmatprep.mubr.bf16.mxu0 0
    %842 = vmatmul.mubr.bf16.gmra.mrb[0].mxu0 %v803
    %v843 = vpop.f32.mrb[0].mxu0
    %v844 = vadd.f32 0.0, %v843
    %v845 = vpop.f32.mrb[0].mxu0
    %v846 = vpop.f32.mrb[0].mxu0
    %v847 = vpop.f32.mrb[0].mxu0
    %848 = vdwg.mxu0
    %849 = vst.msk [vmem:[#allocation2] sm:$0xff] %vm740, %v844
    %v850 = vpack.c.bf16 %v732, %v732
    %852 = vrot.lane.b32.xlu0 %v850, 64
    %v853 = vpop.permute.xlu0 %852
    %v855 = vsel %vm740, %v850, 0
    %v858 = vsel %vm740, %v853, 0
    %860 = vmatprep.subr.bf16.mxu0 0
    %861 = vmatpush1.bf16.xpose.msra.mxu0 %v858
    %862 = vmatprep.subr.bf16.mxu0 0
    %863 = vmatpush1.bf16.xpose.msra.mxu0 0
    %864 = vmatprep.subr.bf16.mxu0 0
    %865 = vmatpush1.bf16.xpose.msra.mxu0 0
    %866 = vmatprep.subr.bf16.mxu0 0
    %867 = vmatpush1.bf16.xpose.msra.mxu0 0
    %868 = vmatprep.subr.bf16.mxu0 0
    %869 = vmatpush1.bf16.xpose.msra.mxu0 0
    %870 = vmatprep.subr.bf16.mxu0 0
    %871 = vmatpush1.bf16.xpose.msra.mxu0 0
    %872 = vmatprep.subr.bf16.mxu0 0
    %873 = vmatpush1.bf16.xpose.msra.mxu0 0
    %874 = vmatprep.subr.bf16.mxu0 0
    %875 = vmatpush1.bf16.xpose.msra.mxu0 0
    %876 = vmatprep.subr.bf16.mxu0 0
    %877 = vmatpush1.bf16.xpose.msra.mxu0 0
    %878 = vmatprep.subr.bf16.mxu0 0
    %879 = vmatpush1.bf16.xpose.msra.mxu0 0
    %880 = vmatprep.subr.bf16.mxu0 0
    %881 = vmatpush1.bf16.xpose.msra.mxu0 0
    %882 = vmatprep.subr.bf16.mxu0 0
    %883 = vmatpush1.bf16.xpose.msra.mxu0 0
    %884 = vmatprep.subr.bf16.mxu0 0
    %885 = vmatpush1.bf16.xpose.msra.mxu0 0
    %886 = vmatprep.subr.bf16.mxu0 0
    %887 = vmatpush1.bf16.xpose.msra.mxu0 0
    %888 = vmatprep.subr.bf16.mxu0 0
    %889 = vmatpush1.bf16.xpose.msra.mxu0 0
    %890 = vmatprep.subr.bf16.mxu0 0
    %891 = vmatpush1.bf16.xpose.msra.mxu0 0
    %892 = vmatprep.mubr.bf16.mxu0 0
    %893 = vmatmul.mubr.bf16.gmra.mrb[0].mxu0 %v855
    %v894 = vpop.f32.mrb[0].mxu0
    %v895 = vadd.f32 0.0, %v894
    %v896 = vpop.f32.mrb[0].mxu0
    %v897 = vpop.f32.mrb[0].mxu0
    %v898 = vpop.f32.mrb[0].mxu0
    %899 = vdwg.mxu0
    %v900 = vmul.f32 %v895, 0.125
    %v901 = vsel %vm788, %v900, -inf
    %902 = vmax.xlane.f32.xlu0 %v901
    %v903 = vpop.xlane.xlu0 %902
    %v904 = vsub.f32 %v900, %v903
    %v905 = vmul.f32 %v904, 1.442695
    %v906 = vpow.pop %v905
    %v907 = vsel %vm788, %v906, 0.0
    %908 = vadd.xlane.f32.xlu0 %v907
    %v909 = vpop.xlane.xlu0 %908
    %v910 = vrcp.pop %v909
    %v911 = vmul.f32 %v906, %v910
    %v912 = vpack.c.bf16 %v911, %v911
    %v913 = vpack.c.bf16 %v734, %v734
    %v915 = vsel %vm788, %v912, 0
    %v918 = vsel %vm805, %v913, 0
    %920 = vmatprep.subr.bf16.mxu0 0
    %921 = vmatpush1.bf16.msra.mxu0 %v918
    %922 = vmatprep.subr.bf16.mxu0 0
    %923 = vmatpush1.bf16.msra.mxu0 0
    %924 = vmatprep.subr.bf16.mxu0 0
    %925 = vmatpush1.bf16.msra.mxu0 0
    %926 = vmatprep.subr.bf16.mxu0 0
    %927 = vmatpush1.bf16.msra.mxu0 0
    %928 = vmatprep.subr.bf16.mxu0 0
    %929 = vmatpush1.bf16.msra.mxu0 0
    %930 = vmatprep.subr.bf16.mxu0 0
    %931 = vmatpush1.bf16.msra.mxu0 0
    %932 = vmatprep.subr.bf16.mxu0 0
    %933 = vmatpush1.bf16.msra.mxu0 0
    %934 = vmatprep.subr.bf16.mxu0 0
    %935 = vmatpush1.bf16.msra.mxu0 0
    %936 = vmatprep.subr.bf16.mxu0 0
    %937 = vmatpush1.bf16.msra.mxu0 0
    %938 = vmatprep.subr.bf16.mxu0 0
    %939 = vmatpush1.bf16.msra.mxu0 0
    %940 = vmatprep.subr.bf16.mxu0 0
    %941 = vmatpush1.bf16.msra.mxu0 0
    %942 = vmatprep.subr.bf16.mxu0 0
    %943 = vmatpush1.bf16.msra.mxu0 0
    %944 = vmatprep.subr.bf16.mxu0 0
    %945 = vmatpush1.bf16.msra.mxu0 0
    %946 = vmatprep.subr.bf16.mxu0 0
    %947 = vmatpush1.bf16.msra.mxu0 0
    %948 = vmatprep.subr.bf16.mxu0 0
    %949 = vmatpush1.bf16.msra.mxu0 0
    %950 = vmatprep.subr.bf16.mxu0 0
    %951 = vmatpush1.bf16.msra.mxu0 0
    %952 = vmatprep.mubr.bf16.mxu0 0
    %953 = vmatmul.mubr.bf16.gmra.mrb[0].mxu0 %v915
    %v954 = vpop.f32.mrb[0].mxu0
    %v955 = vadd.f32 0.0, %v954
    %v956 = vpop.f32.mrb[0].mxu0
    %v957 = vpop.f32.mrb[0].mxu0
    %v958 = vpop.f32.mrb[0].mxu0
    %959 = vdwg.mxu0
    %960 = vst.msk [vmem:[#allocation2 + $0x8] sm:$0xff] %vm740, %v955
    // Predicated region
    $region10: #{_attention.1} parent=1 // pred_check
      _
    $region11: #{_attention.1} parent=1 // pred_check_branch
      %962 = sbr.rel (0) target = $region13
    $region12: #{_attention.1} parent=1 // pred_region
      %s964 = ssub.s32 256, 256
      %965 = vsyncadd [#allocation3], %s964
      %s966 = sshll.u32 [#allocation2], 4
      %s967 = int_to_ptr.vmem [resolvable:$true] %s966
      %972 = dma.vmem_to_hbm [thread:$0]  %s967, 256, %s2, [#allocation3], 128, 128, 8
    $region13: #{_attention.1} parent=1 // pred_fallthru
      _
    // Predicated region
    $region14: #{_attention.1} parent=1 // pred_check
      _
    $region15: #{_attention.1} parent=1 // pred_check_branch
      %974 = sbr.rel (0) target = $region17
    $region16: #{_attention.1} parent=1 // pred_region
      %975 = dma.done [#allocation3], 256
    $region17: #{_attention.1} parent=1 // pred_fallthru
      _
    %976 = vsyncpa [#allocation3], 1

</llo_original>
